<compile_context>
chip_gen: v5e
topology: v5e:2x2
jax: 0.10.0
libtpu: 0.0.40
codegen_flags: <defaults>
</compile_context>

<pallas_src>
import jax
import jax.numpy as jnp
from jax.experimental import pallas as pl
from jax.experimental.pallas import tpu as pltpu

_SUBLANE = 8


def _round_up(x, m):
    return (x + m - 1) // m * m


def _sublane_multiple(itemsize):
    # f32 -> 8, bf16 -> 16, int8 -> 32 (native packed (8,128)/(16,128)/(32,128) tiles).
    return max(_SUBLANE, (4 // max(itemsize, 1)) * _SUBLANE)


def _value_mlp_kernel(x_ref, w1_ref, b1_ref, w2_ref, b2_ref, o_ref):
    # One batch-tile of the value-embedding MLP, fully in VMEM.
    x = x_ref[...]                                              # (tb, D_in)
    h = jnp.dot(x, w1_ref[...], preferred_element_type=jnp.float32)
    h = jnp.maximum(h + b1_ref[...], 0.0)                       # bias + ReLU in f32
    o = jnp.dot(h.astype(w2_ref.dtype), w2_ref[...],
                preferred_element_type=jnp.float32)
    o = jnp.maximum(o + b2_ref[...], 0.0)                       # bias + ReLU in f32
    o_ref[...] = o.astype(o_ref.dtype)


def _vmem_limit_bytes():
    """Scoped-VMEM limit that is safe on v5e/v6e (128 MiB) and v7x (64 MiB per TC)."""
    try:
        cap = pltpu.get_tpu_info().vmem_capacity_bytes
    except Exception:
        cap = 64 * 1024 * 1024          # conservative fallback (v7x per-TC physical)
    return int(min(max(cap // 2, 16 * 1024 * 1024), 48 * 1024 * 1024))


def _choose_batch_tile(B, d_in, h, itemsize, vmem_budget_bytes):
    """Largest sensible batch tile (multiple of the sublane packing) under a VMEM model."""
    sub = _sublane_multiple(itemsize)
    # Weights/biases have constant index_maps => DMA'd once, single-buffered in VMEM.
    weight_bytes = (d_in * h + h * h + 2 * h) * itemsize
    # Double-buffered x and out tiles plus the f32 intermediate per row.
    per_row = 2 * (d_in + h) * itemsize + h * 4
    avail = max(vmem_budget_bytes - weight_bytes, per_row * sub)
    tb = (avail // per_row // sub) * sub
    # 512-row tiles sit at ~85% of the HBM roofline (1024 ~86%) while keeping grid
    # depth for software pipelining and for sharding across v7x's two TensorCores.
    tb = max(sub, min(tb, 512))
    # Never exceed the (sublane-rounded) batch itself.
    return int(min(tb, _round_up(B, sub)))


def prior_distribution_forward(x, w1, b1, w2, b2, *, batch_tile=None):
    """Pallas-fused relu(relu(x @ w1 + b1) @ w2 + b2) == PriorDistribution.forward."""
    B, D_in = x.shape
    H = w1.shape[1]
    assert w1.shape == (D_in, H)
    assert w2.shape == (H, H)
    assert b1.shape == (H,) and b2.shape == (H,)
    dtype = x.dtype
    itemsize = jnp.dtype(dtype).itemsize

    vmem_limit = _vmem_limit_bytes()
    tb = batch_tile or _choose_batch_tile(B, D_in, H, itemsize,
                                          vmem_budget_bytes=vmem_limit - 4 * 1024 * 1024)
    grid = pl.cdiv(B, tb)

    b1_2d = b1.reshape(1, H)
    b2_2d = b2.reshape(1, H)

    # True (unpadded) traffic / flops for XLA's scheduler.
    flops = 2 * B * (D_in * H + H * H)
    bytes_accessed = itemsize * (B * D_in + D_in * H + H * H + 2 * H + B * H)

    out = pl.pallas_call(
        _value_mlp_kernel,
        out_shape=jax.ShapeDtypeStruct((B, H), dtype),
        grid_spec=pltpu.PrefetchScalarGridSpec(
            num_scalar_prefetch=0,
            grid=(grid,),
            in_specs=[
                pl.BlockSpec((tb, D_in), lambda i: (i, 0)),   # x batch tile (pipelined)
                pl.BlockSpec((D_in, H), lambda i: (0, 0)),    # w1 (constant index -> resident)
                pl.BlockSpec((1, H), lambda i: (0, 0)),       # b1
                pl.BlockSpec((H, H), lambda i: (0, 0)),       # w2 (constant index -> resident)
                pl.BlockSpec((1, H), lambda i: (0, 0)),       # b2
            ],
            out_specs=pl.BlockSpec((tb, H), lambda i: (i, 0)),
        ),
        compiler_params=pltpu.CompilerParams(
            dimension_semantics=("parallel",),
            vmem_limit_bytes=vmem_limit,
        ),
        cost_estimate=pl.CostEstimate(flops=flops, transcendentals=0,
                                      bytes_accessed=bytes_accessed),
    )(x, w1, b1_2d, w2, b2_2d)
    return out


def _reference(x, w1, b1, w2, b2):
    h = jnp.maximum(x @ w1 + b1, 0.0)
    return jnp.maximum(h @ w2 + b2, 0.0)


if __name__ == "__main__":
    # Small shapes consistent with the module: embedding_dim=32, input dim=32, batch=16.
    B, D_in, H = 16, 32, 32
    key = jax.random.PRNGKey(0)
    kx, kw1, kb1, kw2, kb2 = jax.random.split(key, 5)

    x = jax.random.normal(kx, (B, D_in), dtype=jnp.float32)
    # Deterministic "weights_init"-style (xavier-ish) init, done in-script.
    w1 = jax.random.normal(kw1, (D_in, H), dtype=jnp.float32) * (1.0 / jnp.sqrt(D_in))
    b1 = jax.random.normal(kb1, (H,), dtype=jnp.float32) * 0.01
    w2 = jax.random.normal(kw2, (H, H), dtype=jnp.float32) * (1.0 / jnp.sqrt(H))
    b2 = jax.random.normal(kb2, (H,), dtype=jnp.float32) * 0.01

    ref = _reference(x, w1, b1, w2, b2)

    out = jax.block_until_ready(prior_distribution_forward(x, w1, b1, w2, b2))
    assert out.shape == (B, H)
    assert jnp.allclose(out, ref, atol=1e-5, rtol=1e-5), "mismatch vs reference"

    # Ragged batch (B=5): single partial block, rows beyond B are never written back.
    out_ragged = jax.block_until_ready(
        prior_distribution_forward(x[:5], w1, b1, w2, b2))
    assert out_ragged.shape == (5, H)
    assert jnp.allclose(out_ragged, ref[:5], atol=1e-5, rtol=1e-5), "ragged mismatch"

    # Multi-step grid with a partial trailing block (B=13, forced tile of 8 -> grid=2).
    out_tail = jax.block_until_ready(
        prior_distribution_forward(x[:13], w1, b1, w2, b2, batch_tile=8))
    assert out_tail.shape == (13, H)
    assert jnp.allclose(out_tail, ref[:13], atol=1e-5, rtol=1e-5), "trailing-block mismatch"

    # TODO(synk): PriorDistribution.unpack / self.proposal are host-side FlatBuffer
    # plumbing with no tensor compute — not representable as a kernel.
    print("KERNEL_OK")
</pallas_src>

<mosaic_0001>
module attributes {stable_mosaic.version = 11 : i64} {
  func.func @_value_mlp_kernel(%arg0: i32, %arg1: memref<16x32xf32, #tpu.memory_space<vmem>>, %arg2: memref<32x32xf32, #tpu.memory_space<vmem>>, %arg3: memref<1x32xf32, #tpu.memory_space<vmem>>, %arg4: memref<32x32xf32, #tpu.memory_space<vmem>>, %arg5: memref<1x32xf32, #tpu.memory_space<vmem>>, %arg6: memref<16x32xf32, #tpu.memory_space<vmem>>) attributes {dimension_semantics = [#tpu.dimension_semantics<parallel>], iteration_bounds = array<i64: 1>, scalar_prefetch = 0 : i64, scratch_operands = 0 : i64, tpu.core_type = #tpu.core_type<tc>, window_params = [{transform_indices = @transform_0, window_bounds = array<i64: 16, 32>}, {pipeline_mode = #tpu.pipeline_mode<synchronous>, transform_indices = @transform_1, window_bounds = array<i64: 32, 32>}, {pipeline_mode = #tpu.pipeline_mode<synchronous>, transform_indices = @transform_2, window_bounds = array<i64: 1, 32>}, {pipeline_mode = #tpu.pipeline_mode<synchronous>, transform_indices = @transform_3, window_bounds = array<i64: 32, 32>}, {pipeline_mode = #tpu.pipeline_mode<synchronous>, transform_indices = @transform_4, window_bounds = array<i64: 1, 32>}, {transform_indices = @transform_5, window_bounds = array<i64: 16, 32>}]} {
    %c0 = arith.constant 0 : index
    %c0_0 = arith.constant 0 : index
    %0 = vector.load %arg1[%c0, %c0_0] : memref<16x32xf32, #tpu.memory_space<vmem>>, vector<16x32xf32>
    %c0_1 = arith.constant 0 : index
    %c0_2 = arith.constant 0 : index
    %1 = vector.load %arg2[%c0_1, %c0_2] : memref<32x32xf32, #tpu.memory_space<vmem>>, vector<32x32xf32>
    %cst = arith.constant dense<0.000000e+00> : vector<16x32xf32>
    %2 = tpu.matmul %0, %1, %cst {dimension_numbers = #tpu.dot_dimension_numbers<[1], [0], [0], [1], [0, 0, 1, 1], [], []>} : vector<16x32xf32>, vector<32x32xf32>, vector<16x32xf32> -> vector<16x32xf32>
    %c0_3 = arith.constant 0 : index
    %c0_4 = arith.constant 0 : index
    %3 = vector.load %arg3[%c0_3, %c0_4] : memref<1x32xf32, #tpu.memory_space<vmem>>, vector<1x32xf32>
    %4 = vector.broadcast %3 : vector<1x32xf32> to vector<16x32xf32>
    %5 = arith.addf %2, %4 : vector<16x32xf32>
    %cst_5 = arith.constant 0.000000e+00 : f32
    %6 = vector.broadcast %cst_5 : f32 to vector<16x32xf32>
    %7 = arith.maximumf %5, %6 : vector<16x32xf32>
    %c0_6 = arith.constant 0 : index
    %c0_7 = arith.constant 0 : index
    %8 = vector.load %arg4[%c0_6, %c0_7] : memref<32x32xf32, #tpu.memory_space<vmem>>, vector<32x32xf32>
    %cst_8 = arith.constant dense<0.000000e+00> : vector<16x32xf32>
    %9 = tpu.matmul %7, %8, %cst_8 {dimension_numbers = #tpu.dot_dimension_numbers<[1], [0], [0], [1], [0, 0, 1, 1], [], []>} : vector<16x32xf32>, vector<32x32xf32>, vector<16x32xf32> -> vector<16x32xf32>
    %c0_9 = arith.constant 0 : index
    %c0_10 = arith.constant 0 : index
    %10 = vector.load %arg5[%c0_9, %c0_10] : memref<1x32xf32, #tpu.memory_space<vmem>>, vector<1x32xf32>
    %11 = vector.broadcast %10 : vector<1x32xf32> to vector<16x32xf32>
    %12 = arith.addf %9, %11 : vector<16x32xf32>
    %cst_11 = arith.constant 0.000000e+00 : f32
    %13 = vector.broadcast %cst_11 : f32 to vector<16x32xf32>
    %14 = arith.maximumf %12, %13 : vector<16x32xf32>
    %c0_12 = arith.constant 0 : index
    %c0_13 = arith.constant 0 : index
    %15 = vector.load %arg6[%c0_12, %c0_13] : memref<16x32xf32, #tpu.memory_space<vmem>>, vector<16x32xf32>
    tpu.vector_store %arg6[%c0_12, %c0_13], %14 {strides = array<i32>} : memref<16x32xf32, #tpu.memory_space<vmem>>, vector<16x32xf32>,
    return
  }
  func.func @transform_0(%arg0: i32) -> (i32, i32) {
    %c0_i32 = arith.constant 0 : i32
    %c0_i32_0 = arith.constant 0 : i32
    return %arg0, %c0_i32 : i32, i32
  }
  func.func @transform_1(%arg0: i32) -> (i32, i32) {
    %c0_i32 = arith.constant 0 : i32
    %c0_i32_0 = arith.constant 0 : i32
    %c0_i32_1 = arith.constant 0 : i32
    return %c0_i32, %c0_i32_0 : i32, i32
  }
  func.func @transform_2(%arg0: i32) -> (i32, i32) {
    %c0_i32 = arith.constant 0 : i32
    %c0_i32_0 = arith.constant 0 : i32
    %c0_i32_1 = arith.constant 0 : i32
    return %c0_i32, %c0_i32_0 : i32, i32
  }
  func.func @transform_3(%arg0: i32) -> (i32, i32) {
    %c0_i32 = arith.constant 0 : i32
    %c0_i32_0 = arith.constant 0 : i32
    %c0_i32_1 = arith.constant 0 : i32
    return %c0_i32, %c0_i32_0 : i32, i32
  }
  func.func @transform_4(%arg0: i32) -> (i32, i32) {
    %c0_i32 = arith.constant 0 : i32
    %c0_i32_0 = arith.constant 0 : i32
    %c0_i32_1 = arith.constant 0 : i32
    return %c0_i32, %c0_i32_0 : i32, i32
  }
  func.func @transform_5(%arg0: i32) -> (i32, i32) {
    %c0_i32 = arith.constant 0 : i32
    %c0_i32_0 = arith.constant 0 : i32
    return %arg0, %c0_i32 : i32, i32
  }
}

</mosaic_0001>

<llo_original>
// kernel: tpu_custom_call.1
$region0: #{tpu_custom_call.1}
  #allocation0 [shape = 'u32[]', space=smem, size = 0x4, offset = 0x4, fixed_abs, tag = 'smem constant byte address 0x4 - core index']
  #allocation1 [shape = 'u32[72,128]{1,0:T(1,128)}', space=vmem, size = 0x9000, scoped, tag = 'internal scratch']
  %s0 = inlined_call_operand.hbm [shape: f32[16,32], index: 0, kind: input, shape index: {}]
  %s1 = inlined_call_operand.hbm [shape: f32[32,32], index: 1, kind: input, shape index: {}]
  %s2 = inlined_call_operand.vmem [shape: f32[1,32], index: 2, kind: input, shape index: {}]
  %s3 = inlined_call_operand.hbm [shape: f32[32,32], index: 3, kind: input, shape index: {}]
  %s4 = inlined_call_operand.vmem [shape: f32[1,32], index: 4, kind: input, shape index: {}]
  %s5 = inlined_call_operand.hbm [shape: f32[16,32], index: 5, kind: output, shape index: {}]
  %s6 = sld [smem:[#allocation0]]
  $region42: #{tpu_custom_call.1} parent=0
    _
  %s8 = ssub.s32 1, %s6
  %s9 = scalar_select 0, %s8, %s6
  $region1: #{tpu_custom_call.1} parent=0
    #allocation2 [shape = 'u8[8192]{0}', space=vmem, size = 0x2000, scoped, tag = 'input window, operand 0, single buffered']
    #allocation3 [shape = 's32[1]{0}', space=sflag, size = 0x4, scoped, tag = 'scoped memory for tpu_custom_call.1']
    #allocation4 [shape = 's32[1]{0}', space=sflag, size = 0x4, scoped, tag = 'scoped memory for tpu_custom_call.1']
    #allocation5 [shape = 'u8[16384]{0}', space=vmem, size = 0x4000, scoped, tag = 'input window, operand 1, single buffered']
    #allocation6 [shape = 's32[1]{0}', space=sflag, size = 0x4, scoped, tag = 'scoped memory for tpu_custom_call.1']
    #allocation7 [shape = 'u8[16384]{0}', space=vmem, size = 0x4000, scoped, tag = 'input window, operand 3, single buffered']
    #allocation8 [shape = 'u8[8192]{0}', space=vmem, size = 0x2000, scoped, tag = 'output window, operand 0, single buffered']
    %10 = vsyncpa [#allocation3], 0
    %11 = vsyncpa [#allocation6], 0
    %12 = vsyncpa [#allocation4], 0
    // Predicated region
    $region2: #{tpu_custom_call.1} parent=1 // pred_check
      _
    $region3: #{tpu_custom_call.1} parent=1 // pred_check_branch
      %14 = sbr.rel (0) target = $region5
    $region4: #{tpu_custom_call.1} parent=1 // pred_region
      %16 = vsyncadd [#allocation3], 0
      %s17 = sshll.u32 %s0, 4
      %s18 = int_to_ptr.hbm [resolvable:$true] %s17
      %s19 = sshll.u32 [#allocation2], 4
      %s20 = int_to_ptr.vmem [resolvable:$true] %s19
      %25 = dma.hbm_to_vmem [thread:$0]  %s18, 256, %s20, [#allocation3], 128, 128, 8
    $region5: #{tpu_custom_call.1} parent=1 // pred_fallthru
      _
    // Predicated region
    $region6: #{tpu_custom_call.1} parent=1 // pred_check
      _
    $region7: #{tpu_custom_call.1} parent=1 // pred_check_branch
      %27 = sbr.rel (0) target = $region9
    $region8: #{tpu_custom_call.1} parent=1 // pred_region
      %29 = vsyncadd [#allocation6], 0
      %s30 = sshll.u32 %s1, 4
      %s31 = int_to_ptr.hbm [resolvable:$true] %s30
      %s32 = sshll.u32 [#allocation5], 4
      %s33 = int_to_ptr.vmem [resolvable:$true] %s32
      %38 = dma.hbm_to_vmem [thread:$0]  %s31, 512, %s33, [#allocation6], 128, 128, 8
    $region9: #{tpu_custom_call.1} parent=1 // pred_fallthru
      _
    // Predicated region
    $region10: #{tpu_custom_call.1} parent=1 // pred_check
      _
    $region11: #{tpu_custom_call.1} parent=1 // pred_check_branch
      %40 = sbr.rel (0) target = $region13
    $region12: #{tpu_custom_call.1} parent=1 // pred_region
      _
    $region13: #{tpu_custom_call.1} parent=1 // pred_fallthru
      _
    // Predicated region
    $region14: #{tpu_custom_call.1} parent=1 // pred_check
      _
    $region15: #{tpu_custom_call.1} parent=1 // pred_check_branch
      %42 = sbr.rel (0) target = $region17
    $region16: #{tpu_custom_call.1} parent=1 // pred_region
      %44 = vsyncadd [#allocation6], 0
      %s45 = sshll.u32 %s3, 4
      %s46 = int_to_ptr.hbm [resolvable:$true] %s45
      %s47 = sshll.u32 [#allocation7], 4
      %s48 = int_to_ptr.vmem [resolvable:$true] %s47
      %53 = dma.hbm_to_vmem [thread:$0]  %s46, 512, %s48, [#allocation6], 128, 128, 8
    $region17: #{tpu_custom_call.1} parent=1 // pred_fallthru
      _
    // Predicated region
    $region18: #{tpu_custom_call.1} parent=1 // pred_check
      _
    $region19: #{tpu_custom_call.1} parent=1 // pred_check_branch
      %55 = sbr.rel (0) target = $region21
    $region20: #{tpu_custom_call.1} parent=1 // pred_region
      _
    $region21: #{tpu_custom_call.1} parent=1 // pred_fallthru
      _
    // Predicated region
    $region22: #{tpu_custom_call.1} parent=1 // pred_check
      _
    $region23: #{tpu_custom_call.1} parent=1 // pred_check_branch
      %57 = sbr.rel (0) target = $region25
    $region24: #{tpu_custom_call.1} parent=1 // pred_region
      %59 = dma.done [#allocation3], 256
    $region25: #{tpu_custom_call.1} parent=1 // pred_fallthru
      _
    // Predicated region
    $region26: #{tpu_custom_call.1} parent=1 // pred_check
      _
    $region27: #{tpu_custom_call.1} parent=1 // pred_check_branch
      %61 = sbr.rel (0) target = $region29
    $region28: #{tpu_custom_call.1} parent=1 // pred_region
      %63 = dma.done [#allocation6], 512
    $region29: #{tpu_custom_call.1} parent=1 // pred_fallthru
      _
    // Predicated region
    $region30: #{tpu_custom_call.1} parent=1 // pred_check
      _
    $region31: #{tpu_custom_call.1} parent=1 // pred_check_branch
      %65 = sbr.rel (0) target = $region33
    $region32: #{tpu_custom_call.1} parent=1 // pred_region
      %67 = dma.done [#allocation6], 512
    $region33: #{tpu_custom_call.1} parent=1 // pred_fallthru
      _
    %v68 = vld [vmem:[#allocation2] sm:$0xff]
    %v69 = vld [vmem:[#allocation2 + $0x8] sm:$0xff]
    %v70 = vld [vmem:[#allocation5] sm:$0xff]
    %v71 = vld [vmem:[#allocation5 + $0x8] sm:$0xff]
    %v72 = vld [vmem:[#allocation5 + $0x10] sm:$0xff]
    %v73 = vld [vmem:[#allocation5 + $0x18] sm:$0xff]
    %v74 = vld [vmem:[%s2] sm:$0x1]
    %v76 = vperm.slane %v74, 0
    %vm78 = vcmask 261120
    %v80 = vsel %vm78, %v68, 0
    %v83 = vsel %vm78, %v69, 0
    %85 = vmatpush.msra.mxu0 0.0
    %86 = vmatpush.msra.mxu0 0.0
    %87 = vmatpush.msra.mxu0 0.0
    %88 = vmatpush.msra.mxu0 0.0
    %89 = vmatpush.msra.mxu0 0.0
    %90 = vmatpush.msra.mxu0 0.0
    %91 = vmatpush.msra.mxu0 0.0
    %92 = vmatpush.msra.mxu0 0.0
    %93 = vmatpush.msra.mxu0 0.0
    %94 = vmatpush.msra.mxu0 0.0
    %95 = vmatpush.msra.mxu0 0.0
    %96 = vmatpush.msra.mxu0 0.0
    %97 = vmatpush.msra.mxu0 %v73
    %98 = vmatpush.msra.mxu0 %v72
    %99 = vmatpush.msra.mxu0 %v71
    %100 = vmatpush.msra.mxu0 %v70
    %101 = vmatmul.f32.gmra.mxu0 %v80
    %v102 = vpop.f32.mrf.mxu0
    %v103 = vadd.f32 %v76, %v102
    %104 = vmatmul.f32.gmra.mxu0 %v83
    %v105 = vpop.f32.mrf.mxu0
    %v106 = vadd.f32 %v76, %v105
    %107 = vdwg.mxu0
    %v108 = vmax.f32 %v103, 0.0
    %v109 = vmax.f32 %v106, 0.0
    %v110 = vld [vmem:[#allocation7] sm:$0xff]
    %v111 = vld [vmem:[#allocation7 + $0x8] sm:$0xff]
    %v112 = vld [vmem:[#allocation7 + $0x10] sm:$0xff]
    %v113 = vld [vmem:[#allocation7 + $0x18] sm:$0xff]
    %v114 = vld [vmem:[%s4] sm:$0x1]
    %v116 = vperm.slane %v114, 0
    %v119 = vsel %vm78, %v108, 0
    %v122 = vsel %vm78, %v109, 0
    %124 = vmatpush.msra.mxu0 0.0
    %125 = vmatpush.msra.mxu0 0.0
    %126 = vmatpush.msra.mxu0 0.0
    %127 = vmatpush.msra.mxu0 0.0
    %128 = vmatpush.msra.mxu0 0.0
    %129 = vmatpush.msra.mxu0 0.0
    %130 = vmatpush.msra.mxu0 0.0
    %131 = vmatpush.msra.mxu0 0.0
    %132 = vmatpush.msra.mxu0 0.0
    %133 = vmatpush.msra.mxu0 0.0
    %134 = vmatpush.msra.mxu0 0.0
    %135 = vmatpush.msra.mxu0 0.0
    %136 = vmatpush.msra.mxu0 %v113
    %137 = vmatpush.msra.mxu0 %v112
    %138 = vmatpush.msra.mxu0 %v111
    %139 = vmatpush.msra.mxu0 %v110
    %140 = vmatmul.f32.gmra.mxu0 %v119
    %v141 = vpop.f32.mrf.mxu0
    %v142 = vadd.f32 %v116, %v141
    %143 = vmatmul.f32.gmra.mxu0 %v122
    %v144 = vpop.f32.mrf.mxu0
    %v145 = vadd.f32 %v116, %v144
    %146 = vdwg.mxu0
    %v147 = vmax.f32 %v142, 0.0
    %v148 = vmax.f32 %v145, 0.0
    %149 = vst.msk [vmem:[#allocation8] sm:$0xff] %vm78, %v147
    %150 = vst.msk [vmem:[#allocation8 + $0x8] sm:$0xff] %vm78, %v148
    // Predicated region
    $region34: #{tpu_custom_call.1} parent=1 // pred_check
      _
    $region35: #{tpu_custom_call.1} parent=1 // pred_check_branch
      %152 = sbr.rel (0) target = $region37
    $region36: #{tpu_custom_call.1} parent=1 // pred_region
      %154 = vsyncadd [#allocation4], 0
      %s155 = sshll.u32 [#allocation8], 4
      %s156 = int_to_ptr.vmem [resolvable:$true] %s155
      %s157 = sshll.u32 %s5, 4
      %s158 = int_to_ptr.hbm [resolvable:$true] %s157
      %163 = dma.vmem_to_hbm [thread:$0]  %s156, 256, %s158, [#allocation4], 128, 128, 8
    $region37: #{tpu_custom_call.1} parent=1 // pred_fallthru
      _
    // Predicated region
    $region38: #{tpu_custom_call.1} parent=1 // pred_check
      _
    $region39: #{tpu_custom_call.1} parent=1 // pred_check_branch
      %165 = sbr.rel (0) target = $region41
    $region40: #{tpu_custom_call.1} parent=1 // pred_region
      %167 = dma.done [#allocation4], 256
    $region41: #{tpu_custom_call.1} parent=1 // pred_fallthru
      _
    %168 = vsyncpa [#allocation3], 1
    %169 = vsyncpa [#allocation6], 1
    %170 = vsyncpa [#allocation4], 1

</llo_original>
